<compile_context>
chip_gen: v5e
topology: v5e:2x2
jax: 0.10.0
libtpu: 0.0.40
codegen_flags: <defaults>
</compile_context>

<pallas_src>
import jax
import jax.numpy as jnp
from jax.experimental import pallas as pl
from jax.experimental.pallas import tpu as pltpu

INPUT_SIZE = 1
STATE_SIZE = 3
OUTPUT_SIZE = 1
FEAT = INPUT_SIZE + STATE_SIZE          # 4
OUT_TOT = OUTPUT_SIZE + STATE_SIZE      # 4  (row 0 = output, rows 1:4 = state_d)
STATE_HIDDEN = 3                        # "3neuron" from the experiment name
OUTPUT_HIDDEN = 3
HIDDEN = OUTPUT_HIDDEN + STATE_HIDDEN   # 6

# Row offsets of the packed weight slab (each matrix starts on an 8-sublane
# tile boundary).  Packed shape: (24, 8) float32 (< 1 KiB).
W1_ROW, W2_ROW, WLIN_ROW = 0, 8, 16
WPACK_SHAPE = (24, 8)


def sinn_kernel(w_ref, x_ref, out_ref):
    x = x_ref[...]                                            # (FEAT, TB), lane-dense

    w1 = w_ref[W1_ROW:W1_ROW + HIDDEN, 0:FEAT]                # (6, 4)  [Wo1; Ws1]
    w2 = w_ref[W2_ROW:W2_ROW + OUT_TOT, 0:HIDDEN]             # (4, 6)  blkdiag(Wo2, Ws2)
    wl = w_ref[WLIN_ROW:WLIN_ROW + OUT_TOT, 0:FEAT]           # (4, 4)  [Wol; Wsl]

    # Fused nonlinear branches of StateNet + OutputNet.
    h = jnp.tanh(jnp.dot(w1, x, preferred_element_type=jnp.float32))   # (6, TB)

    # Linear branches + recombination; row layout already equals
    # cat([output, state_d], dim=1) in feature-major form.
    y = (jnp.dot(wl, x, preferred_element_type=jnp.float32)
         + jnp.dot(w2, h, preferred_element_type=jnp.float32))          # (4, TB)

    out_ref[...] = y                                           # single full-block store


def sinn_forward(x, wpack, *, tile_b=512):
    """x: (B, FEAT) float32 (PyTorch layout); wpack: packed (24, 8) weights.

    Returns (B, OUTPUT_SIZE + STATE_SIZE), matching the PyTorch forward.
    The kernel itself runs feature-major (batch on the lane axis); the cheap
    layout transposes happen here in the wrapper.
    """
    B, F = x.shape
    assert F == FEAT
    assert wpack.shape == WPACK_SHAPE

    x_fm = x.T                                                 # (FEAT, B)
    n_blocks = pl.cdiv(B, tile_b)
    Bp = n_blocks * tile_b
    if Bp != B:
        x_fm = jnp.pad(x_fm, ((0, 0), (0, Bp - B)))

    out_fm = pl.pallas_call(
        sinn_kernel,
        out_shape=jax.ShapeDtypeStruct((OUT_TOT, Bp), jnp.float32),
        grid_spec=pltpu.PrefetchScalarGridSpec(
            num_scalar_prefetch=0,
            grid=(n_blocks,),
            in_specs=[
                pl.BlockSpec(WPACK_SHAPE, lambda i: (0, 0)),       # packed weights
                pl.BlockSpec((FEAT, tile_b), lambda i: (0, i)),    # X (feature-major)
            ],
            out_specs=pl.BlockSpec((OUT_TOT, tile_b), lambda i: (0, i)),
        ),
        compiler_params=pltpu.CompilerParams(
            dimension_semantics=("parallel",)),
    )(wpack, x_fm)

    return out_fm[:, :B].T                                     # back to (B, 4)


def init_params(key):
    """PyTorch-Linear-style uniform(-1/sqrt(fan_in), +1/sqrt(fan_in)) weights,
    stored in PyTorch's (out_features, in_features) layout."""
    ks = jax.random.split(key, 6)

    def lin(k, fan_out, fan_in):
        bound = 1.0 / jnp.sqrt(fan_in)
        return jax.random.uniform(k, (fan_out, fan_in), jnp.float32,
                                  -bound, bound)

    return {
        "ws1": lin(ks[0], STATE_HIDDEN, FEAT),          # (3, 4)
        "ws2": lin(ks[1], STATE_SIZE, STATE_HIDDEN),    # (3, 3)
        "wsl": lin(ks[2], STATE_SIZE, FEAT),            # (3, 4)
        "wo1": lin(ks[3], OUTPUT_HIDDEN, FEAT),         # (3, 4)
        "wo2": lin(ks[4], OUTPUT_SIZE, OUTPUT_HIDDEN),  # (1, 3)
        "wol": lin(ks[5], OUTPUT_SIZE, FEAT),           # (1, 4)
    }


def pack_params(p):
    """Pack the six PyTorch-layout matrices into one (24, 8) slab:
       rows  0: 6 , cols 0:4 -> W1   = [Wo1; Ws1]
       rows  8:12, cols 0:6 -> W2   = blockdiag(Wo2, Ws2)
       rows 16:20, cols 0:4 -> Wlin = [Wol; Wsl]
    The zero off-diagonal blocks of W2 preserve exact results."""
    w1 = jnp.concatenate([p["wo1"], p["ws1"]], axis=0)                  # (6, 4)
    w2 = jnp.zeros((OUT_TOT, HIDDEN), jnp.float32)
    w2 = w2.at[0:OUTPUT_SIZE, 0:OUTPUT_HIDDEN].set(p["wo2"])
    w2 = w2.at[OUTPUT_SIZE:, OUTPUT_HIDDEN:].set(p["ws2"])              # (4, 6)
    wl = jnp.concatenate([p["wol"], p["wsl"]], axis=0)                  # (4, 4)

    wpack = jnp.zeros(WPACK_SHAPE, jnp.float32)
    wpack = wpack.at[W1_ROW:W1_ROW + HIDDEN, 0:FEAT].set(w1)
    wpack = wpack.at[W2_ROW:W2_ROW + OUT_TOT, 0:HIDDEN].set(w2)
    wpack = wpack.at[WLIN_ROW:WLIN_ROW + OUT_TOT, 0:FEAT].set(wl)
    return wpack


def sinn_reference(x, p):
    """Pure-JAX replica of the PyTorch forward (x: (B, FEAT))."""
    state_d = jnp.tanh(x @ p["ws1"].T) @ p["ws2"].T + x @ p["wsl"].T
    output = jnp.tanh(x @ p["wo1"].T) @ p["wo2"].T + x @ p["wol"].T
    return jnp.concatenate([output, state_d], axis=1)


if __name__ == "__main__":
    key = jax.random.PRNGKey(0)
    k_param, k_x = jax.random.split(key)

    B = 1024                       # 2 grid steps at tile_b=512 (feeds 2 TCs on v7x)
    params = init_params(k_param)
    wpack = pack_params(params)
    x = jax.random.normal(k_x, (B, FEAT), jnp.float32)

    out = sinn_forward(x, wpack, tile_b=512)
    out = jax.block_until_ready(out)

    ref = sinn_reference(x, params)
    assert out.shape == (B, OUTPUT_SIZE + STATE_SIZE)
    assert jnp.allclose(out, ref, atol=1e-5, rtol=1e-5)

    print("KERNEL_OK")
</pallas_src>

<mosaic_0001>
module attributes {stable_mosaic.version = 11 : i64} {
  func.func @sinn_kernel(%arg0: i32, %arg1: memref<24x8xf32, #tpu.memory_space<vmem>>, %arg2: memref<4x512xf32, #tpu.memory_space<vmem>>, %arg3: memref<4x512xf32, #tpu.memory_space<vmem>>) attributes {dimension_semantics = [#tpu.dimension_semantics<parallel>], iteration_bounds = array<i64: 2>, scalar_prefetch = 0 : i64, scratch_operands = 0 : i64, tpu.core_type = #tpu.core_type<tc>, window_params = [{pipeline_mode = #tpu.pipeline_mode<synchronous>, transform_indices = @transform_0, window_bounds = array<i64: 24, 8>}, {transform_indices = @transform_1, window_bounds = array<i64: 4, 512>}, {transform_indices = @transform_2, window_bounds = array<i64: 4, 512>}]} {
    %c0 = arith.constant 0 : index
    %c0_0 = arith.constant 0 : index
    %0 = vector.load %arg2[%c0, %c0_0] : memref<4x512xf32, #tpu.memory_space<vmem>>, vector<4x512xf32>
    %c0_1 = arith.constant 0 : index
    %c0_2 = arith.constant 0 : index
    %1 = vector.load %arg1[%c0_1, %c0_2] : memref<24x8xf32, #tpu.memory_space<vmem>>, vector<6x4xf32>
    %c8 = arith.constant 8 : index
    %c0_3 = arith.constant 0 : index
    %2 = vector.load %arg1[%c8, %c0_3] : memref<24x8xf32, #tpu.memory_space<vmem>>, vector<4x6xf32>
    %c16 = arith.constant 16 : index
    %c0_4 = arith.constant 0 : index
    %3 = vector.load %arg1[%c16, %c0_4] : memref<24x8xf32, #tpu.memory_space<vmem>>, vector<4x4xf32>
    %cst = arith.constant dense<0.000000e+00> : vector<6x512xf32>
    %4 = tpu.matmul %1, %0, %cst {dimension_numbers = #tpu.dot_dimension_numbers<[1], [0], [0], [1], [0, 0, 1, 1], [], []>} : vector<6x4xf32>, vector<4x512xf32>, vector<6x512xf32> -> vector<6x512xf32>
    %5 = math.tanh %4 : vector<6x512xf32>
    %cst_5 = arith.constant dense<0.000000e+00> : vector<4x512xf32>
    %6 = tpu.matmul %3, %0, %cst_5 {dimension_numbers = #tpu.dot_dimension_numbers<[1], [0], [0], [1], [0, 0, 1, 1], [], []>} : vector<4x4xf32>, vector<4x512xf32>, vector<4x512xf32> -> vector<4x512xf32>
    %cst_6 = arith.constant dense<0.000000e+00> : vector<4x512xf32>
    %7 = tpu.matmul %2, %5, %cst_6 {dimension_numbers = #tpu.dot_dimension_numbers<[1], [0], [0], [1], [0, 0, 1, 1], [], []>} : vector<4x6xf32>, vector<6x512xf32>, vector<4x512xf32> -> vector<4x512xf32>
    %8 = arith.addf %6, %7 : vector<4x512xf32>
    %c0_7 = arith.constant 0 : index
    %c0_8 = arith.constant 0 : index
    %9 = vector.load %arg3[%c0_7, %c0_8] : memref<4x512xf32, #tpu.memory_space<vmem>>, vector<4x512xf32>
    tpu.vector_store %arg3[%c0_7, %c0_8], %8 {strides = array<i32>} : memref<4x512xf32, #tpu.memory_space<vmem>>, vector<4x512xf32>,
    return
  }
  func.func @transform_0(%arg0: i32) -> (i32, i32) {
    %c0_i32 = arith.constant 0 : i32
    %c0_i32_0 = arith.constant 0 : i32
    %c0_i32_1 = arith.constant 0 : i32
    return %c0_i32, %c0_i32_0 : i32, i32
  }
  func.func @transform_1(%arg0: i32) -> (i32, i32) {
    %c0_i32 = arith.constant 0 : i32
    %c0_i32_0 = arith.constant 0 : i32
    return %c0_i32, %arg0 : i32, i32
  }
  func.func @transform_2(%arg0: i32) -> (i32, i32) {
    %c0_i32 = arith.constant 0 : i32
    %c0_i32_0 = arith.constant 0 : i32
    return %c0_i32, %arg0 : i32, i32
  }
}

</mosaic_0001>

<llo_original>
// kernel: tpu_custom_call.1
$region0: #{tpu_custom_call.1}
  #allocation0 [shape = 'u32[]', space=smem, size = 0x4, offset = 0x4, fixed_abs, tag = 'smem constant byte address 0x4 - core index']
  #allocation1 [shape = 'u32[72,128]{1,0:T(1,128)}', space=vmem, size = 0x9000, scoped, tag = 'internal scratch']
  %s0 = inlined_call_operand.vmem [shape: f32[24,8], index: 0, kind: input, shape index: {}]
  %s1 = inlined_call_operand.vmem [shape: f32[4,1024], index: 1, kind: input, shape index: {}]
  %s2 = inlined_call_operand.hbm [shape: f32[4,1024], index: 2, kind: output, shape index: {}]
  %s3 = sld [smem:[#allocation0]]
  $region41: #{tpu_custom_call.1} parent=0
    _
  %s5 = ssub.s32 1, %s3
  %s6 = scalar_select 0, %s5, %s3
  $region1: #{tpu_custom_call.1} parent=0
    #allocation2 [shape = 'u8[16384]{0}', space=vmem, size = 0x4000, scoped, tag = 'output window, operand 0']
    #allocation3 [shape = 's32[2]{0}', space=sflag, size = 0x8, scoped, tag = 'scoped memory for tpu_custom_call.1']
    %7 = vsyncpa [#allocation3], 0
    %s8 = scalar_lea.sflag [#allocation3], 1
    %9 = vsyncpa %s8, 0
    loop: start=0, step=1, limit=4
    $region2: #{tpu_custom_call.1} parent=1 // loop_pre_header
      _
    $region3: #{tpu_custom_call.1} parent=1 // loop_header
      %s11 = sphi 0, %s15
      %p12 = scmp.ge.s32.totalorder %s11, 4
      %s19 = sphi 0, %s19
      %s21 = sphi 0, %s19
      %s22 = sphi 0, %s21
      %s36 = sphi 0, %s22
      %s42 = sphi 0, %s44
      %s45 = sphi 0, %s42
      %s46 = sphi 0, %s45
      %s62 = sphi 0, %s46
      %s68 = sphi 0, %s70
      %s71 = sphi 0, %s68
      %s72 = sphi 0, %s71
      %s88 = sphi 0, %s72
    $region4: #{tpu_custom_call.1} parent=1 // loop_header_branch
      %14 = sbr.rel (%p12) target = $region8
    $region5: #{tpu_custom_call.1} parent=1 // loop_body
      %s16 = ssub.s32 %s11, 1
      %s17 = ssub.s32 %s11, 2
      %s18 = sadd.s32 %s11, 1
      %s20 = sadd.s32 %s19, 1
      %p23 = scmp.eq.s32.totalorder %s11, 1
      %p24 = scmp.ne.s32.totalorder %s19, %s21
      %p25 = scmp.eq.s32.totalorder %s11, 0
      %p26 = por %p24, %p25
      %p27 = scmp.ne.s32.totalorder %s19, %s21
      %p28 = scmp.eq.s32.totalorder %s16, 1
      %p29 = por %p27, %p28
      %p30 = scmp.ne.s32.totalorder %s21, %s22
      %p31 = scmp.eq.s32.totalorder %s16, 0
      %p32 = por %p30, %p31
      %p33 = scmp.ne.s32.totalorder %s21, %s22
      %p34 = scmp.eq.s32.totalorder %s17, 1
      %p35 = por %p33, %p34
      %p37 = scmp.ne.s32.totalorder %s22, %s36
      %p38 = scmp.eq.s32.totalorder %s17, 0
      %p39 = por %p37, %p38
      %s40 = ssub.s32 %s11, %s18
      %p41 = scmp.eq.s32.totalorder %s40, 0
      %s43 = sadd.s32 %s42, 1
      %s44 = scalar_select %p41, %s42, %s43
      %p47 = pneg %p41
      %p48 = scmp.eq.s32.totalorder %s11, 1
      %p49 = por %p47, %p48
      %p50 = scmp.ne.s32.totalorder %s42, %s45
      %p51 = scmp.eq.s32.totalorder %s11, 0
      %p52 = por %p50, %p51
      %p53 = scmp.ne.s32.totalorder %s42, %s45
      %p54 = scmp.eq.s32.totalorder %s16, 1
      %p55 = por %p53, %p54
      %p56 = scmp.ne.s32.totalorder %s45, %s46
      %p57 = scmp.eq.s32.totalorder %s16, 0
      %p58 = por %p56, %p57
      %p59 = scmp.ne.s32.totalorder %s45, %s46
      %p60 = scmp.eq.s32.totalorder %s17, 1
      %p61 = por %p59, %p60
      %p63 = scmp.ne.s32.totalorder %s46, %s62
      %p64 = scmp.eq.s32.totalorder %s17, 0
      %p65 = por %p63, %p64
      %s66 = ssub.s32 %s11, %s18
      %p67 = scmp.eq.s32.totalorder %s66, 0
      %s69 = sadd.s32 %s68, 1
      %s70 = scalar_select %p67, %s68, %s69
      %p73 = pneg %p67
      %p74 = scmp.eq.s32.totalorder %s11, 1
      %p75 = por %p73, %p74
      %p76 = scmp.ne.s32.totalorder %s68, %s71
      %p77 = scmp.eq.s32.totalorder %s11, 0
      %p78 = por %p76, %p77
      %p79 = scmp.ne.s32.totalorder %s68, %s71
      %p80 = scmp.eq.s32.totalorder %s16, 1
      %p81 = por %p79, %p80
      %p82 = scmp.ne.s32.totalorder %s71, %s72
      %p83 = scmp.eq.s32.totalorder %s16, 0
      %p84 = por %p82, %p83
      %p85 = scmp.ne.s32.totalorder %s71, %s72
      %p86 = scmp.eq.s32.totalorder %s17, 1
      %p87 = por %p85, %p86
      %p89 = scmp.ne.s32.totalorder %s72, %s88
      %p90 = scmp.eq.s32.totalorder %s17, 0
      %p91 = por %p89, %p90
      %p92 = scmp.le.s32.totalorder 1, %s11
      %p93 = scmp.lt.s32.totalorder %s11, 3
      %p94 = pnand %p92, %p93
      %p95 = pneg %p94
      // Predicated region
      $region9: #{tpu_custom_call.1} parent=5 // pred_check
        _
      $region10: #{tpu_custom_call.1} parent=5 // pred_check_branch
        %97 = sbr.rel (%p94) target = $region12
      $region11: #{tpu_custom_call.1} parent=5 // pred_region
        %s98 = ssub.s32 %s11, 1
        // Predicated region
        $region13: #{tpu_custom_call.1} parent=11 // pred_check
          %p99 = pneg %p32
        $region14: #{tpu_custom_call.1} parent=11 // pred_check_branch
          %101 = sbr.rel (%p99) target = $region16
        $region15: #{tpu_custom_call.1} parent=11 // pred_region
          _
        $region16: #{tpu_custom_call.1} parent=11 // pred_fallthru
          _
      $region12: #{tpu_custom_call.1} parent=5 // pred_fallthru
        _
      %p102 = scmp.lt.s32.totalorder %s11, 2
      // Predicated region
      $region17: #{tpu_custom_call.1} parent=5 // pred_check
        %p103 = pneg %p102
      $region18: #{tpu_custom_call.1} parent=5 // pred_check_branch
        %105 = sbr.rel (%p103) target = $region20
      $region19: #{tpu_custom_call.1} parent=5 // pred_region
        // Predicated region
        $region21: #{tpu_custom_call.1} parent=19 // pred_check
          %p106 = pneg %p52
        $region22: #{tpu_custom_call.1} parent=19 // pred_check_branch
          %108 = sbr.rel (%p106) target = $region24
        $region23: #{tpu_custom_call.1} parent=19 // pred_region
          %s109 = smul.u32 4, %s11
          %p110 = scmp.lt.s32.totalorder %s109, 7
          %s111 = scalar_select %p110, %s109, 7
          %s112 = smul.addr %s111, 4
          %s113 = scalar_lea.vmem %s1, %s112
          %s114 = smul.u32 4, %s11
        $region24: #{tpu_custom_call.1} parent=19 // pred_fallthru
          _
      $region20: #{tpu_custom_call.1} parent=5 // pred_fallthru
        _
      %p115 = scmp.le.s32.totalorder 1, %s11
      %p116 = scmp.lt.s32.totalorder %s11, 3
      %p117 = pnand %p115, %p116
      %p118 = pneg %p117
      // Predicated region
      $region25: #{tpu_custom_call.1} parent=5 // pred_check
        _
      $region26: #{tpu_custom_call.1} parent=5 // pred_check_branch
        %120 = sbr.rel (%p117) target = $region28
      $region27: #{tpu_custom_call.1} parent=5 // pred_region
        %s121 = ssub.s32 %s11, 1
        %p122 = pneg %p32
        %p123 = pneg %p29
        %s124 = smul.u32 4, %s16
        %p125 = scmp.lt.s32.totalorder %s124, 7
        %s126 = scalar_select %p125, %s124, 7
        %s127 = smul.addr %s126, 4
        %s128 = scalar_lea.vmem %s1, %s127
        %p129 = pneg %p58
        %p130 = pneg %p55
        %p131 = pneg %p84
        %p132 = pneg %p81
        %s133 = sand.u32 %s71, 1
        %s134 = scalar_lea.sflag [#allocation3], %s133
        %s135 = sand.u32 %s71, 1
        %s136 = smul.addr %s135, 16
        %s137 = scalar_lea.vmem [#allocation2], %s136
        %s138 = smul.u32 4, %s16
        %p139 = scmp.lt.s32.totalorder %s138, 7
        %s140 = scalar_select %p139, %s138, 7
        %s141 = smul.addr %s140, 4
        %s142 = scalar_lea.vmem %s1, %s141
        %s143 = smul.u32 4, %s16
        %s144 = smul.u32 4, %s16
        %v145 = vld [vmem:[%s142] sm:$0xff]
        %v146 = vld [vmem:[%s142 + $0x8] sm:$0xff]
        %v147 = vld [vmem:[%s0] sm:$0x3f]
        %v148 = vld [vmem:[%s0 + $0x8] sm:$0xf]
        %v149 = vld [vmem:[%s0 + $0x10] sm:$0xf]
        %152 = vst [vmem:[#allocation1] ss:$2 sm:$0xff] %v145
        %s153 = scalar_lea.vmem [#allocation1], 16
        %154 = vst [vmem:[%s153] ss:$2 sm:$0xff] %v146
        %v155 = vld.sshfl [vmem:[#allocation1] sm:$0xff pattern:$0x75316420]
        %v156 = vld.sshfl [vmem:[#allocation1 + $0x8] sm:$0xff pattern:$0x75316420]
        %v157 = vld.sshfl [vmem:[#allocation1 + $0x10] sm:$0xff pattern:$0x75316420]
        %v158 = vld.sshfl [vmem:[#allocation1 + $0x18] sm:$0xff pattern:$0x75316420]
        %vm159 = vcmask 31744
        %v161 = vsel %vm159, %v147, 0
        %vm163 = vcmask 1043456
        %v164 = vsel %vm163, %v155, 0
        %v166 = vsel %vm163, %v156, 0
        %v168 = vsel %vm163, %v157, 0
        %v170 = vsel %vm163, %v158, 0
        %172 = vmatpush.msra.mxu0 0.0
        %173 = vmatpush.msra.mxu0 0.0
        %174 = vmatpush.msra.mxu0 0.0
        %175 = vmatpush.msra.mxu0 0.0
        %176 = vmatpush.msra.mxu0 0.0
        %177 = vmatpush.msra.mxu0 0.0
        %178 = vmatpush.msra.mxu0 0.0
        %179 = vmatpush.msra.mxu0 0.0
        %180 = vmatpush.msra.mxu0 0.0
        %181 = vmatpush.msra.mxu0 0.0
        %182 = vmatpush.msra.mxu0 0.0
        %183 = vmatpush.msra.mxu0 0.0
        %184 = vmatpush.msra.mxu0 0.0
        %185 = vmatpush.msra.mxu0 0.0
        %186 = vmatpush.msra.mxu0 0.0
        %187 = vmatpush.msra.mxu0 %v164
        %188 = vmatmul.f32.gmra.mxu0 %v161
        %v189 = vpop.f32.mrf.mxu0
        %v190 = vadd.f32 0.0, %v189
        %191 = vdwg.mxu0
        %192 = vmatpush.msra.mxu0 0.0
        %193 = vmatpush.msra.mxu0 0.0
        %194 = vmatpush.msra.mxu0 0.0
        %195 = vmatpush.msra.mxu0 0.0
        %196 = vmatpush.msra.mxu0 0.0
        %197 = vmatpush.msra.mxu0 0.0
        %198 = vmatpush.msra.mxu0 0.0
        %199 = vmatpush.msra.mxu0 0.0
        %200 = vmatpush.msra.mxu0 0.0
        %201 = vmatpush.msra.mxu0 0.0
        %202 = vmatpush.msra.mxu0 0.0
        %203 = vmatpush.msra.mxu0 0.0
        %204 = vmatpush.msra.mxu0 0.0
        %205 = vmatpush.msra.mxu0 0.0
        %206 = vmatpush.msra.mxu0 0.0
        %207 = vmatpush.msra.mxu0 %v166
        %208 = vmatmul.f32.gmra.mxu0 %v161
        %v209 = vpop.f32.mrf.mxu0
        %v210 = vadd.f32 0.0, %v209
        %211 = vdwg.mxu0
        %212 = vmatpush.msra.mxu0 0.0
        %213 = vmatpush.msra.mxu0 0.0
        %214 = vmatpush.msra.mxu0 0.0
        %215 = vmatpush.msra.mxu0 0.0
        %216 = vmatpush.msra.mxu0 0.0
        %217 = vmatpush.msra.mxu0 0.0
        %218 = vmatpush.msra.mxu0 0.0
        %219 = vmatpush.msra.mxu0 0.0
        %220 = vmatpush.msra.mxu0 0.0
        %221 = vmatpush.msra.mxu0 0.0
        %222 = vmatpush.msra.mxu0 0.0
        %223 = vmatpush.msra.mxu0 0.0
        %224 = vmatpush.msra.mxu0 0.0
        %225 = vmatpush.msra.mxu0 0.0
        %226 = vmatpush.msra.mxu0 0.0
        %227 = vmatpush.msra.mxu0 %v168
        %228 = vmatmul.f32.gmra.mxu0 %v161
        %v229 = vpop.f32.mrf.mxu0
        %v230 = vadd.f32 0.0, %v229
        %231 = vdwg.mxu0
        %232 = vmatpush.msra.mxu0 0.0
        %233 = vmatpush.msra.mxu0 0.0
        %234 = vmatpush.msra.mxu0 0.0
        %235 = vmatpush.msra.mxu0 0.0
        %236 = vmatpush.msra.mxu0 0.0
        %237 = vmatpush.msra.mxu0 0.0
        %238 = vmatpush.msra.mxu0 0.0
        %239 = vmatpush.msra.mxu0 0.0
        %240 = vmatpush.msra.mxu0 0.0
        %241 = vmatpush.msra.mxu0 0.0
        %242 = vmatpush.msra.mxu0 0.0
        %243 = vmatpush.msra.mxu0 0.0
        %244 = vmatpush.msra.mxu0 0.0
        %245 = vmatpush.msra.mxu0 0.0
        %246 = vmatpush.msra.mxu0 0.0
        %247 = vmatpush.msra.mxu0 %v170
        %248 = vmatmul.f32.gmra.mxu0 %v161
        %v249 = vpop.f32.mrf.mxu0
        %v250 = vadd.f32 0.0, %v249
        %251 = vdwg.mxu0
        %v252 = vtanh.pop %v190
        %v253 = vtanh.pop %v210
        %v254 = vtanh.pop %v230
        %v255 = vtanh.pop %v250
        %vm256 = vcmask 48128
        %v258 = vsel %vm256, %v148, 0
        %vm260 = vcmask 1045504
        %v262 = vsel %vm260, %v252, 0
        %v265 = vsel %vm260, %v253, 0
        %v268 = vsel %vm260, %v254, 0
        %v271 = vsel %vm260, %v255, 0
        %273 = vmatpush.msra.mxu0 0.0
        %274 = vmatpush.msra.mxu0 0.0
        %275 = vmatpush.msra.mxu0 0.0
        %276 = vmatpush.msra.mxu0 0.0
        %277 = vmatpush.msra.mxu0 0.0
        %278 = vmatpush.msra.mxu0 0.0
        %279 = vmatpush.msra.mxu0 0.0
        %280 = vmatpush.msra.mxu0 0.0
        %281 = vmatpush.msra.mxu0 0.0
        %282 = vmatpush.msra.mxu0 0.0
        %283 = vmatpush.msra.mxu0 0.0
        %284 = vmatpush.msra.mxu0 0.0
        %285 = vmatpush.msra.mxu0 0.0
        %286 = vmatpush.msra.mxu0 0.0
        %287 = vmatpush.msra.mxu0 0.0
        %288 = vmatpush.msra.mxu0 %v262
        %289 = vmatmul.f32.gmra.mxu0 %v258
        %v290 = vpop.f32.mrf.mxu0
        %v291 = vadd.f32 0.0, %v290
        %292 = vdwg.mxu0
        %293 = vmatpush.msra.mxu0 0.0
        %294 = vmatpush.msra.mxu0 0.0
        %295 = vmatpush.msra.mxu0 0.0
        %296 = vmatpush.msra.mxu0 0.0
        %297 = vmatpush.msra.mxu0 0.0
        %298 = vmatpush.msra.mxu0 0.0
        %299 = vmatpush.msra.mxu0 0.0
        %300 = vmatpush.msra.mxu0 0.0
        %301 = vmatpush.msra.mxu0 0.0
        %302 = vmatpush.msra.mxu0 0.0
        %303 = vmatpush.msra.mxu0 0.0
        %304 = vmatpush.msra.mxu0 0.0
        %305 = vmatpush.msra.mxu0 0.0
        %306 = vmatpush.msra.mxu0 0.0
        %307 = vmatpush.msra.mxu0 0.0
        %308 = vmatpush.msra.mxu0 %v265
        %309 = vmatmul.f32.gmra.mxu0 %v258
        %v310 = vpop.f32.mrf.mxu0
        %v311 = vadd.f32 0.0, %v310
        %312 = vdwg.mxu0
        %313 = vmatpush.msra.mxu0 0.0
        %314 = vmatpush.msra.mxu0 0.0
        %315 = vmatpush.msra.mxu0 0.0
        %316 = vmatpush.msra.mxu0 0.0
        %317 = vmatpush.msra.mxu0 0.0
        %318 = vmatpush.msra.mxu0 0.0
        %319 = vmatpush.msra.mxu0 0.0
        %320 = vmatpush.msra.mxu0 0.0
        %321 = vmatpush.msra.mxu0 0.0
        %322 = vmatpush.msra.mxu0 0.0
        %323 = vmatpush.msra.mxu0 0.0
        %324 = vmatpush.msra.mxu0 0.0
        %325 = vmatpush.msra.mxu0 0.0
        %326 = vmatpush.msra.mxu0 0.0
        %327 = vmatpush.msra.mxu0 0.0
        %328 = vmatpush.msra.mxu0 %v268
        %329 = vmatmul.f32.gmra.mxu0 %v258
        %v330 = vpop.f32.mrf.mxu0
        %v331 = vadd.f32 0.0, %v330
        %332 = vdwg.mxu0
        %333 = vmatpush.msra.mxu0 0.0
        %334 = vmatpush.msra.mxu0 0.0
        %335 = vmatpush.msra.mxu0 0.0
        %336 = vmatpush.msra.mxu0 0.0
        %337 = vmatpush.msra.mxu0 0.0
        %338 = vmatpush.msra.mxu0 0.0
        %339 = vmatpush.msra.mxu0 0.0
        %340 = vmatpush.msra.mxu0 0.0
        %341 = vmatpush.msra.mxu0 0.0
        %342 = vmatpush.msra.mxu0 0.0
        %343 = vmatpush.msra.mxu0 0.0
        %344 = vmatpush.msra.mxu0 0.0
        %345 = vmatpush.msra.mxu0 0.0
        %346 = vmatpush.msra.mxu0 0.0
        %347 = vmatpush.msra.mxu0 0.0
        %348 = vmatpush.msra.mxu0 %v271
        %349 = vmatmul.f32.gmra.mxu0 %v258
        %v350 = vpop.f32.mrf.mxu0
        %v351 = vadd.f32 0.0, %v350
        %352 = vdwg.mxu0
        %353 = vst [vmem:[#allocation1] ss:$2 sm:$0xff] %v145
        %s354 = scalar_lea.vmem [#allocation1], 16
        %355 = vst [vmem:[%s354] ss:$2 sm:$0xff] %v146
        %v356 = vld.sshfl [vmem:[#allocation1] sm:$0xff pattern:$0x75316420]
        %v357 = vld.sshfl [vmem:[#allocation1 + $0x8] sm:$0xff pattern:$0x75316420]
        %v358 = vld.sshfl [vmem:[#allocation1 + $0x10] sm:$0xff pattern:$0x75316420]
        %v359 = vld.sshfl [vmem:[#allocation1 + $0x18] sm:$0xff pattern:$0x75316420]
        %v361 = vsel %vm159, %v149, 0
        %v363 = vsel %vm163, %v356, 0
        %v365 = vsel %vm163, %v357, 0
        %v367 = vsel %vm163, %v358, 0
        %v369 = vsel %vm163, %v359, 0
        %371 = vmatpush.msra.mxu0 0.0
        %372 = vmatpush.msra.mxu0 0.0
        %373 = vmatpush.msra.mxu0 0.0
        %374 = vmatpush.msra.mxu0 0.0
        %375 = vmatpush.msra.mxu0 0.0
        %376 = vmatpush.msra.mxu0 0.0
        %377 = vmatpush.msra.mxu0 0.0
        %378 = vmatpush.msra.mxu0 0.0
        %379 = vmatpush.msra.mxu0 0.0
        %380 = vmatpush.msra.mxu0 0.0
        %381 = vmatpush.msra.mxu0 0.0
        %382 = vmatpush.msra.mxu0 0.0
        %383 = vmatpush.msra.mxu0 0.0
        %384 = vmatpush.msra.mxu0 0.0
        %385 = vmatpush.msra.mxu0 0.0
        %386 = vmatpush.msra.mxu0 %v363
        %387 = vmatmul.f32.gmra.mxu0 %v361
        %v388 = vpop.f32.mrf.mxu0
        %v389 = vadd.f32 %v291, %v388
        %390 = vdwg.mxu0
        %391 = vmatpush.msra.mxu0 0.0
        %392 = vmatpush.msra.mxu0 0.0
        %393 = vmatpush.msra.mxu0 0.0
        %394 = vmatpush.msra.mxu0 0.0
        %395 = vmatpush.msra.mxu0 0.0
        %396 = vmatpush.msra.mxu0 0.0
        %397 = vmatpush.msra.mxu0 0.0
        %398 = vmatpush.msra.mxu0 0.0
        %399 = vmatpush.msra.mxu0 0.0
        %400 = vmatpush.msra.mxu0 0.0
        %401 = vmatpush.msra.mxu0 0.0
        %402 = vmatpush.msra.mxu0 0.0
        %403 = vmatpush.msra.mxu0 0.0
        %404 = vmatpush.msra.mxu0 0.0
        %405 = vmatpush.msra.mxu0 0.0
        %406 = vmatpush.msra.mxu0 %v365
        %407 = vmatmul.f32.gmra.mxu0 %v361
        %v408 = vpop.f32.mrf.mxu0
        %v409 = vadd.f32 %v311, %v408
        %410 = vdwg.mxu0
        %411 = vmatpush.msra.mxu0 0.0
        %412 = vmatpush.msra.mxu0 0.0
        %413 = vmatpush.msra.mxu0 0.0
        %414 = vmatpush.msra.mxu0 0.0
        %415 = vmatpush.msra.mxu0 0.0
        %416 = vmatpush.msra.mxu0 0.0
        %417 = vmatpush.msra.mxu0 0.0
        %418 = vmatpush.msra.mxu0 0.0
        %419 = vmatpush.msra.mxu0 0.0
        %420 = vmatpush.msra.mxu0 0.0
        %421 = vmatpush.msra.mxu0 0.0
        %422 = vmatpush.msra.mxu0 0.0
        %423 = vmatpush.msra.mxu0 0.0
        %424 = vmatpush.msra.mxu0 0.0
        %425 = vmatpush.msra.mxu0 0.0
        %426 = vmatpush.msra.mxu0 %v367
        %427 = vmatmul.f32.gmra.mxu0 %v361
        %v428 = vpop.f32.mrf.mxu0
        %v429 = vadd.f32 %v331, %v428
        %430 = vdwg.mxu0
        %431 = vmatpush.msra.mxu0 0.0
        %432 = vmatpush.msra.mxu0 0.0
        %433 = vmatpush.msra.mxu0 0.0
        %434 = vmatpush.msra.mxu0 0.0
        %435 = vmatpush.msra.mxu0 0.0
        %436 = vmatpush.msra.mxu0 0.0
        %437 = vmatpush.msra.mxu0 0.0
        %438 = vmatpush.msra.mxu0 0.0
        %439 = vmatpush.msra.mxu0 0.0
        %440 = vmatpush.msra.mxu0 0.0
        %441 = vmatpush.msra.mxu0 0.0
        %442 = vmatpush.msra.mxu0 0.0
        %443 = vmatpush.msra.mxu0 0.0
        %444 = vmatpush.msra.mxu0 0.0
        %445 = vmatpush.msra.mxu0 0.0
        %446 = vmatpush.msra.mxu0 %v369
        %447 = vmatmul.f32.gmra.mxu0 %v361
        %v448 = vpop.f32.mrf.mxu0
        %v449 = vadd.f32 %v351, %v448
        %450 = vdwg.mxu0
        %v455 = vrot.slane %v409, 4
        %v456 = vrot.slane %v449, 4
        %v457 = vsel %vm163, %v389, %v455
        %v458 = vsel %vm163, %v429, %v456
        %461 = vst [vmem:[%s137] sm:$0xff] %v457
        %462 = vst [vmem:[%s137 + $0x8] sm:$0xff] %v458
        %s463 = sand.u32 %s71, 1
        %s464 = scalar_lea.sflag [#allocation3], %s463
        %s465 = sand.u32 %s71, 1
        %s466 = smul.addr %s465, 16
        %s467 = scalar_lea.vmem [#allocation2], %s466
        // Predicated region
        $region29: #{tpu_custom_call.1} parent=27 // pred_check
          %p468 = pneg %p81
        $region30: #{tpu_custom_call.1} parent=27 // pred_check_branch
          %470 = sbr.rel (%p468) target = $region32
        $region31: #{tpu_custom_call.1} parent=27 // pred_region
          %s471 = smul.u32 4, %s16
          %473 = vsyncadd %s464, 0
          %s474 = smul.addr %s471, 4
          %s475 = scalar_lea.hbm %s2, %s474
          %s477 = sshll.u32 %s467, 4
          %s478 = int_to_ptr.vmem [resolvable:$true] %s477
          %s479 = sshll.u32 %s475, 4
          %s480 = int_to_ptr.hbm [resolvable:$true] %s479
          %482 = dma.vmem_to_hbm [thread:$0]  %s478, 256, %s480, %s464
        $region32: #{tpu_custom_call.1} parent=27 // pred_fallthru
          _
      $region28: #{tpu_custom_call.1} parent=5 // pred_fallthru
        _
      %p483 = scmp.le.s32.totalorder 2, %s11
      // Predicated region
      $region33: #{tpu_custom_call.1} parent=5 // pred_check
        %p484 = pneg %p483
      $region34: #{tpu_custom_call.1} parent=5 // pred_check_branch
        %486 = sbr.rel (%p484) target = $region36
      $region35: #{tpu_custom_call.1} parent=5 // pred_region
        %s487 = ssub.s32 %s11, 2
        // Predicated region
        $region37: #{tpu_custom_call.1} parent=35 // pred_check
          %p488 = pneg %p87
        $region38: #{tpu_custom_call.1} parent=35 // pred_check_branch
          %490 = sbr.rel (%p488) target = $region40
        $region39: #{tpu_custom_call.1} parent=35 // pred_region
          %s491 = sand.u32 %s72, 1
          %s492 = scalar_lea.sflag [#allocation3], %s491
          %s493 = sand.u32 %s72, 1
          %s494 = smul.addr %s493, 16
          %s495 = scalar_lea.vmem [#allocation2], %s494
          %497 = dma.done %s492, 256
        $region40: #{tpu_custom_call.1} parent=35 // pred_fallthru
          _
      $region36: #{tpu_custom_call.1} parent=5 // pred_fallthru
        _
    $region6: #{tpu_custom_call.1} parent=1 // loop_footer
      %s15 = sadd.s32 1, %s11
    $region7: #{tpu_custom_call.1} parent=1 // loop_footer_branch
      %10 = sbr.rel target = $region3
    $region8: #{tpu_custom_call.1} parent=1 // loop_exit
      _
    %498 = vsyncpa [#allocation3], 1
    %s499 = scalar_lea.sflag [#allocation3], 1
    %500 = vsyncpa %s499, 1

</llo_original>
